<compile_context>
chip_gen: v5e
topology: v5e:2x2
jax: 0.10.0
libtpu: 0.0.40
codegen_flags: <defaults>
</compile_context>

<pallas_src>
import jax
import jax.numpy as jnp
import numpy as np
from jax.experimental import pallas as pl
from jax.experimental.pallas import tpu as pltpu


def _argmax_kernel(e_ref, idx_ref):
    """Per-tile argmax over the class (lane) axis.

    e_ref:   (TB, C) float tile in VMEM
    idx_ref: (TB, 1) int32 tile in VMEM (column output; relayout dropped)
    """
    e = e_ref[...]                                            # (TB, C)
    tb, c = e.shape

    col = jax.lax.broadcasted_iota(jnp.int32, (tb, c), 1)
    row_max = jnp.max(e, axis=-1, keepdims=True)              # (TB, 1)
    # First index of the row maximum; if the row contains NaN, torch.argmax
    # returns the (first) NaN position - fold that into the same pass.
    is_max = (e == row_max) | jnp.isnan(e)
    cand = jnp.where(is_max, col, jnp.int32(c))
    idx_ref[...] = jnp.min(cand, axis=-1, keepdims=True).astype(jnp.int32)


def _vmem_capacity_bytes() -> int:
    """Per-generation VMEM capacity (conservative fallback = v7x per-TC)."""
    try:
        return int(pltpu.get_tpu_info().vmem_capacity_bytes)
    except Exception:
        return 64 * 1024 * 1024


def _round_up(x: int, m: int) -> int:
    return ((x + m - 1) // m) * m


def _pick_time_tile(n_rows: int, n_classes: int, itemsize: int) -> int:
    """Time-tile rows (multiple of 128).

    Lane-padding-aware: a (TB, C) input block occupies TB * round_up(C,128) *
    itemsize in VMEM, and the (TB, 1) int32 output buffer pads to 128 lanes too.
    Budget is derived from the queried VMEM capacity (v7x = 64 MiB, v5e/v6e =
    128 MiB), and TB stops growing once n_tiles would drop below 4 so the
    "parallel" grid still feeds both v7x TensorCores.
    """
    c_pad = _round_up(max(n_classes, 1), 128)
    per_row = c_pad * itemsize + 128 * 4          # padded input row + padded int32 output row
    budget = max(4 << 20, _vmem_capacity_bytes() // 8)   # double-buffered working-set budget

    tb = 128
    while (tb < 8192
           and 2 * (tb * 2) * per_row <= budget
           and pl.cdiv(n_rows, tb * 2) >= 4):
        tb *= 2
    return tb


def pallas_argmax_last_dim(emission: jax.Array, *, force_pallas: bool = False) -> jax.Array:
    """argmax over dim=-1 of a (..., C) emission via a Pallas TPU kernel.

    Leading dims (batch, time) are flattened into one row axis so a batch of
    utterances runs in a single pallas_call.
    """
    *lead, num_classes = emission.shape
    flat = emission.reshape(-1, num_classes)
    n_rows = flat.shape[0]
    itemsize = flat.dtype.itemsize

    # Tiny inputs: pallas_call fixed launch + padding costs more than XLA's
    # fused argmax.
    if not force_pallas and n_rows * num_classes * itemsize < (64 << 10):
        return jnp.argmax(emission, axis=-1).astype(jnp.int32)

    tb = _pick_time_tile(n_rows, num_classes, itemsize)
    n_tiles = pl.cdiv(n_rows, tb)
    n_pad = n_tiles * tb
    if n_pad != n_rows:
        # Padded rows produce index 0 and are sliced off below.
        flat = jnp.pad(flat, ((0, n_pad - n_rows), (0, 0)))

    # Lane-padding-aware VMEM need: double-buffered input tile + output column.
    c_pad = _round_up(num_classes, 128)
    vmem_need = 2 * tb * (c_pad * itemsize + 128 * 4)
    vmem_limit = int(min(max(2 * vmem_need, 16 << 20),
                         max(16 << 20, _vmem_capacity_bytes() // 2)))

    out = pl.pallas_call(
        _argmax_kernel,
        out_shape=jax.ShapeDtypeStruct((n_pad, 1), jnp.int32),
        grid=(n_tiles,),
        in_specs=[pl.BlockSpec((tb, num_classes), lambda i: (i, 0))],
        out_specs=pl.BlockSpec((tb, 1), lambda i: (i, 0)),
        compiler_params=pltpu.CompilerParams(
            dimension_semantics=("parallel",),     # megacore sharding on v7x
            vmem_limit_bytes=vmem_limit,
        ),
    )(flat)

    idx = out[:n_rows, 0]
    return idx.reshape(tuple(lead))


def greedy_ctc_decode(emission: jax.Array, labels: str, blank: int = 0) -> str:
    """Full GreedyCTCDecoder.forward semantics for a single (T, C) emission.

    1. argmax over class dim            -> Pallas kernel (device hot path)
    2. unique_consecutive over time dim -> host (vectorized numpy)
    3. drop blank, join label chars     -> host (returns a Python str)
    """
    idx = np.asarray(jax.device_get(pallas_argmax_last_dim(emission))).reshape(-1)

    # torch.unique_consecutive(indices, dim=-1)
    if idx.size:
        keep = np.ones(idx.shape, dtype=bool)
        keep[1:] = idx[1:] != idx[:-1]
        idx = idx[keep]

    # TODO(synk): blank-filter + label join produce a Python str and have no
    # device-side equivalent.
    return ''.join(labels[int(i)] for i in idx if int(i) != blank)


if __name__ == "__main__":
    # Deterministic synthetic setup: C=32 classes, labels[0] is the CTC blank.
    C = 32
    labels = "-" + "abcdefghijklmnopqrstuvwxyz" + "01234"
    assert len(labels) == C

    # Single utterance: T=1000 time steps (exercises multiple time tiles + padding).
    T = 1000
    emission = jax.random.normal(jax.random.PRNGKey(0), (T, C), dtype=jnp.float32)

    idx_dev = jax.block_until_ready(pallas_argmax_last_dim(emission))
    ref_idx = np.asarray(jnp.argmax(emission, axis=-1))
    got_idx = np.asarray(jax.device_get(idx_dev))
    assert got_idx.shape == (T,)
    assert np.array_equal(ref_idx, got_idx), (ref_idx[:16], got_idx[:16])

    # Batched path: (B, T, C) in a single pallas_call.
    emission_b = jax.random.normal(jax.random.PRNGKey(1), (2, 300, C), dtype=jnp.float32)
    idx_b = jax.block_until_ready(pallas_argmax_last_dim(emission_b))
    ref_b = np.asarray(jnp.argmax(emission_b, axis=-1))
    assert np.array_equal(ref_b, np.asarray(idx_b))

    # NaN guard matches torch.argmax semantics (index of the first NaN).
    # np.array(...) makes a writable host copy (np.asarray of a jax array is read-only).
    e_nan = np.array(jax.device_get(
        jax.random.normal(jax.random.PRNGKey(2), (8, C), dtype=jnp.float32)))
    e_nan[3, 7] = np.nan
    idx_nan = np.asarray(jax.device_get(
        pallas_argmax_last_dim(jnp.asarray(e_nan), force_pallas=True)))
    assert int(idx_nan[3]) == 7

    # Full decoder path (kernel argmax + host dedup/blank-filter/join).
    transcript = greedy_ctc_decode(emission, labels, blank=0)
    assert isinstance(transcript, str)

    print("KERNEL_OK")
</pallas_src>

<mosaic_0001>
module attributes {stable_mosaic.version = 11 : i64} {
  func.func @_argmax_kernel(%arg0: i32, %arg1: memref<256x32xf32, #tpu.memory_space<vmem>>, %arg2: memref<256x1xi32, #tpu.memory_space<vmem>>) attributes {dimension_semantics = [#tpu.dimension_semantics<parallel>], iteration_bounds = array<i64: 4>, scalar_prefetch = 0 : i64, scratch_operands = 0 : i64, tpu.core_type = #tpu.core_type<tc>, window_params = [{transform_indices = @transform_0, window_bounds = array<i64: 256, 32>}, {transform_indices = @transform_1, window_bounds = array<i64: 256, 1>}]} {
    %c0 = arith.constant 0 : index
    %c0_0 = arith.constant 0 : index
    %0 = vector.load %arg1[%c0, %c0_0] : memref<256x32xf32, #tpu.memory_space<vmem>>, vector<256x32xf32>
    %1 = tpu.iota {dimensions = array<i32: 1>} : vector<256x32xi32>
    %cst = arith.constant dense<0xFF800000> : vector<256xf32>
    %2 = vector.multi_reduction <maximumf>, %0, %cst [1] : vector<256x32xf32> to vector<256xf32>
    %3 = vector.shape_cast %2 : vector<256xf32> to vector<256x1xf32>
    %4 = vector.broadcast %3 : vector<256x1xf32> to vector<256x32xf32>
    %5 = arith.cmpf oeq, %0, %4 : vector<256x32xf32>
    %6 = arith.cmpf one, %0, %0 : vector<256x32xf32>
    %7 = arith.ori %5, %6 : vector<256x32xi1>
    %c32_i32 = arith.constant 32 : i32
    %8 = vector.broadcast %c32_i32 : i32 to vector<256x32xi32>
    %9 = arith.select %7, %1, %8 : vector<256x32xi1>, vector<256x32xi32>
    %cst_1 = arith.constant dense<2147483647> : vector<256xi32>
    %10 = vector.multi_reduction <minsi>, %9, %cst_1 [1] : vector<256x32xi32> to vector<256xi32>
    %11 = vector.shape_cast %10 : vector<256xi32> to vector<256x1xi32>
    %c0_2 = arith.constant 0 : index
    %c0_3 = arith.constant 0 : index
    %12 = vector.load %arg2[%c0_2, %c0_3] : memref<256x1xi32, #tpu.memory_space<vmem>>, vector<256x1xi32>
    tpu.vector_store %arg2[%c0_2, %c0_3], %11 {strides = array<i32>} : memref<256x1xi32, #tpu.memory_space<vmem>>, vector<256x1xi32>,
    return
  }
  func.func @transform_0(%arg0: i32) -> (i32, i32) {
    %c0_i32 = arith.constant 0 : i32
    %c0_i32_0 = arith.constant 0 : i32
    return %arg0, %c0_i32 : i32, i32
  }
  func.func @transform_1(%arg0: i32) -> (i32, i32) {
    %c0_i32 = arith.constant 0 : i32
    %c0_i32_0 = arith.constant 0 : i32
    return %arg0, %c0_i32 : i32, i32
  }
}

</mosaic_0001>

<llo_original>
// kernel: tpu_custom_call.1
$region0: #{tpu_custom_call.1}
  #allocation0 [shape = 'u32[]', space=smem, size = 0x4, offset = 0x4, fixed_abs, tag = 'smem constant byte address 0x4 - core index']
  #allocation1 [shape = 'u32[72,128]{1,0:T(1,128)}', space=vmem, size = 0x9000, scoped, tag = 'internal scratch']
  %s0 = inlined_call_operand.vmem [shape: f32[1024,32], index: 0, kind: input, shape index: {}]
  %s1 = inlined_call_operand.vmem [shape: s32[1024,1], index: 1, kind: output, shape index: {}]
  %s2 = sld [smem:[#allocation0]]
  $region37: #{tpu_custom_call.1} parent=0
    _
  %s4 = ssub.s32 1, %s2
  %s5 = scalar_select 0, %s4, %s2
  loop: start=0, step=1, limit=6
  $region2: #{tpu_custom_call.1} parent=0 // loop_pre_header
    _
  $region3: #{tpu_custom_call.1} parent=0 // loop_header
    %s7 = sphi 0, %s11
    %p8 = scmp.ge.s32.totalorder %s7, 6
    %s17 = sphi 0, %s19
    %s20 = sphi 0, %s17
    %s21 = sphi 0, %s20
    %s37 = sphi 0, %s21
    %s43 = sphi 0, %s45
    %s46 = sphi 0, %s43
    %s47 = sphi 0, %s46
    %s63 = sphi 0, %s47
  $region4: #{tpu_custom_call.1} parent=0 // loop_header_branch
    %10 = sbr.rel (%p8) target = $region8
  $region5: #{tpu_custom_call.1} parent=0 // loop_body
    %s12 = ssub.s32 %s7, 1
    %s13 = ssub.s32 %s7, 2
    %s14 = sadd.s32 %s7, 1
    %s15 = ssub.s32 %s7, %s14
    %p16 = scmp.eq.s32.totalorder %s15, 0
    %s18 = sadd.s32 %s17, 1
    %s19 = scalar_select %p16, %s17, %s18
    %p22 = pneg %p16
    %p23 = scmp.eq.s32.totalorder %s7, 3
    %p24 = por %p22, %p23
    %p25 = scmp.ne.s32.totalorder %s17, %s20
    %p26 = scmp.eq.s32.totalorder %s7, 0
    %p27 = por %p25, %p26
    %p28 = scmp.ne.s32.totalorder %s17, %s20
    %p29 = scmp.eq.s32.totalorder %s12, 3
    %p30 = por %p28, %p29
    %p31 = scmp.ne.s32.totalorder %s20, %s21
    %p32 = scmp.eq.s32.totalorder %s12, 0
    %p33 = por %p31, %p32
    %p34 = scmp.ne.s32.totalorder %s20, %s21
    %p35 = scmp.eq.s32.totalorder %s13, 3
    %p36 = por %p34, %p35
    %p38 = scmp.ne.s32.totalorder %s21, %s37
    %p39 = scmp.eq.s32.totalorder %s13, 0
    %p40 = por %p38, %p39
    %s41 = ssub.s32 %s7, %s14
    %p42 = scmp.eq.s32.totalorder %s41, 0
    %s44 = sadd.s32 %s43, 1
    %s45 = scalar_select %p42, %s43, %s44
    %p48 = pneg %p42
    %p49 = scmp.eq.s32.totalorder %s7, 3
    %p50 = por %p48, %p49
    %p51 = scmp.ne.s32.totalorder %s43, %s46
    %p52 = scmp.eq.s32.totalorder %s7, 0
    %p53 = por %p51, %p52
    %p54 = scmp.ne.s32.totalorder %s43, %s46
    %p55 = scmp.eq.s32.totalorder %s12, 3
    %p56 = por %p54, %p55
    %p57 = scmp.ne.s32.totalorder %s46, %s47
    %p58 = scmp.eq.s32.totalorder %s12, 0
    %p59 = por %p57, %p58
    %p60 = scmp.ne.s32.totalorder %s46, %s47
    %p61 = scmp.eq.s32.totalorder %s13, 3
    %p62 = por %p60, %p61
    %p64 = scmp.ne.s32.totalorder %s47, %s63
    %p65 = scmp.eq.s32.totalorder %s13, 0
    %p66 = por %p64, %p65
    %p67 = scmp.le.s32.totalorder 1, %s7
    %p68 = scmp.lt.s32.totalorder %s7, 5
    %p69 = pnand %p67, %p68
    %p70 = pneg %p69
    // Predicated region
    $region9: #{tpu_custom_call.1} parent=5 // pred_check
      _
    $region10: #{tpu_custom_call.1} parent=5 // pred_check_branch
      %72 = sbr.rel (%p69) target = $region12
    $region11: #{tpu_custom_call.1} parent=5 // pred_region
      %s73 = ssub.s32 %s7, 1
    $region12: #{tpu_custom_call.1} parent=5 // pred_fallthru
      _
    %p74 = scmp.lt.s32.totalorder %s7, 4
    // Predicated region
    $region13: #{tpu_custom_call.1} parent=5 // pred_check
      %p75 = pneg %p74
    $region14: #{tpu_custom_call.1} parent=5 // pred_check_branch
      %77 = sbr.rel (%p75) target = $region16
    $region15: #{tpu_custom_call.1} parent=5 // pred_region
      // Predicated region
      $region17: #{tpu_custom_call.1} parent=15 // pred_check
        %p78 = pneg %p27
      $region18: #{tpu_custom_call.1} parent=15 // pred_check_branch
        %80 = sbr.rel (%p78) target = $region20
      $region19: #{tpu_custom_call.1} parent=15 // pred_region
        %s81 = smul.u32 32, %s7
        %p82 = scmp.lt.s32.totalorder %s81, 127
        %s83 = scalar_select %p82, %s81, 127
        %s84 = smul.addr %s83, 8
        %s85 = scalar_lea.vmem %s0, %s84
        %s86 = smul.u32 32, %s7
      $region20: #{tpu_custom_call.1} parent=15 // pred_fallthru
        _
    $region16: #{tpu_custom_call.1} parent=5 // pred_fallthru
      _
    %p87 = scmp.le.s32.totalorder 1, %s7
    %p88 = scmp.lt.s32.totalorder %s7, 5
    %p89 = pnand %p87, %p88
    %p90 = pneg %p89
    // Predicated region
    $region21: #{tpu_custom_call.1} parent=5 // pred_check
      _
    $region22: #{tpu_custom_call.1} parent=5 // pred_check_branch
      %92 = sbr.rel (%p89) target = $region24
    $region23: #{tpu_custom_call.1} parent=5 // pred_region
      %s93 = ssub.s32 %s7, 1
      %s94 = smul.u32 32, %s12
      %p95 = scmp.lt.s32.totalorder %s94, 127
      %s96 = scalar_select %p95, %s94, 127
      %s97 = smul.addr %s96, 8
      %s98 = scalar_lea.vmem %s0, %s97
      %p99 = pneg %p33
      %p100 = pneg %p30
      %p101 = pneg %p59
      %p102 = pneg %p56
      %s103 = smul.u32 32, %s12
      %p104 = scmp.lt.s32.totalorder %s103, 127
      %s105 = scalar_select %p104, %s103, 127
      %s106 = smul.addr %s105, 8
      %s107 = scalar_lea.vmem %s1, %s106
      %s108 = smul.u32 32, %s12
      %p109 = scmp.lt.s32.totalorder %s108, 127
      %s110 = scalar_select %p109, %s108, 127
      %s111 = smul.addr %s110, 8
      %s112 = scalar_lea.vmem %s0, %s111
      %s113 = smul.u32 32, %s12
      %s114 = smul.u32 32, %s12
      %p115 = scmp.lt.s32.totalorder %s114, 127
      %s116 = scalar_select %p115, %s114, 127
      %s117 = smul.addr %s116, 8
      %s118 = scalar_lea.vmem %s1, %s117
      %s119 = smul.u32 32, %s12
      %v120 = vld [vmem:[%s112] sm:$0xff]
      %v121 = vld [vmem:[%s112 + $0x8] sm:$0xff]
      %v122 = vld [vmem:[%s112 + $0x10] sm:$0xff]
      %v123 = vld [vmem:[%s112 + $0x18] sm:$0xff]
      %v124 = vld [vmem:[%s112 + $0x20] sm:$0xff]
      %v125 = vld [vmem:[%s112 + $0x28] sm:$0xff]
      %v126 = vld [vmem:[%s112 + $0x30] sm:$0xff]
      %v127 = vld [vmem:[%s112 + $0x38] sm:$0xff]
      %v128 = vld [vmem:[%s112 + $0x40] sm:$0xff]
      %v129 = vld [vmem:[%s112 + $0x48] sm:$0xff]
      %v130 = vld [vmem:[%s112 + $0x50] sm:$0xff]
      %v131 = vld [vmem:[%s112 + $0x58] sm:$0xff]
      %v132 = vld [vmem:[%s112 + $0x60] sm:$0xff]
      %v133 = vld [vmem:[%s112 + $0x68] sm:$0xff]
      %v134 = vld [vmem:[%s112 + $0x70] sm:$0xff]
      %v135 = vld [vmem:[%s112 + $0x78] sm:$0xff]
      %v136 = vld [vmem:[%s112 + $0x80] sm:$0xff]
      %v137 = vld [vmem:[%s112 + $0x88] sm:$0xff]
      %v138 = vld [vmem:[%s112 + $0x90] sm:$0xff]
      %v139 = vld [vmem:[%s112 + $0x98] sm:$0xff]
      %v140 = vld [vmem:[%s112 + $0xa0] sm:$0xff]
      %v141 = vld [vmem:[%s112 + $0xa8] sm:$0xff]
      %v142 = vld [vmem:[%s112 + $0xb0] sm:$0xff]
      %v143 = vld [vmem:[%s112 + $0xb8] sm:$0xff]
      %v144 = vld [vmem:[%s112 + $0xc0] sm:$0xff]
      %v145 = vld [vmem:[%s112 + $0xc8] sm:$0xff]
      %v146 = vld [vmem:[%s112 + $0xd0] sm:$0xff]
      %v147 = vld [vmem:[%s112 + $0xd8] sm:$0xff]
      %v148 = vld [vmem:[%s112 + $0xe0] sm:$0xff]
      %v149 = vld [vmem:[%s112 + $0xe8] sm:$0xff]
      %v150 = vld [vmem:[%s112 + $0xf0] sm:$0xff]
      %v151 = vld [vmem:[%s112 + $0xf8] sm:$0xff]
      %v152 = vlaneseq
      %v153 = vand.u32 %v152, 127
      %vm154 = vcmask 261120
      %v155 = vsel %vm154, %v120, -inf
      %156 = vmax.xlane.f32.xlu0 %v155
      %v157 = vpop.xlane.xlu0 %156
      %v158 = vsel %vm154, %v121, -inf
      %159 = vmax.xlane.f32.xlu0 %v158
      %v160 = vpop.xlane.xlu0 %159
      %v161 = vsel %vm154, %v122, -inf
      %162 = vmax.xlane.f32.xlu0 %v161
      %v163 = vpop.xlane.xlu0 %162
      %v164 = vsel %vm154, %v123, -inf
      %165 = vmax.xlane.f32.xlu0 %v164
      %v166 = vpop.xlane.xlu0 %165
      %v167 = vsel %vm154, %v124, -inf
      %168 = vmax.xlane.f32.xlu0 %v167
      %v169 = vpop.xlane.xlu0 %168
      %v170 = vsel %vm154, %v125, -inf
      %171 = vmax.xlane.f32.xlu0 %v170
      %v172 = vpop.xlane.xlu0 %171
      %v173 = vsel %vm154, %v126, -inf
      %174 = vmax.xlane.f32.xlu0 %v173
      %v175 = vpop.xlane.xlu0 %174
      %v176 = vsel %vm154, %v127, -inf
      %177 = vmax.xlane.f32.xlu0 %v176
      %v178 = vpop.xlane.xlu0 %177
      %v179 = vsel %vm154, %v128, -inf
      %180 = vmax.xlane.f32.xlu0 %v179
      %v181 = vpop.xlane.xlu0 %180
      %v182 = vsel %vm154, %v129, -inf
      %183 = vmax.xlane.f32.xlu0 %v182
      %v184 = vpop.xlane.xlu0 %183
      %v185 = vsel %vm154, %v130, -inf
      %186 = vmax.xlane.f32.xlu0 %v185
      %v187 = vpop.xlane.xlu0 %186
      %v188 = vsel %vm154, %v131, -inf
      %189 = vmax.xlane.f32.xlu0 %v188
      %v190 = vpop.xlane.xlu0 %189
      %v191 = vsel %vm154, %v132, -inf
      %192 = vmax.xlane.f32.xlu0 %v191
      %v193 = vpop.xlane.xlu0 %192
      %v194 = vsel %vm154, %v133, -inf
      %195 = vmax.xlane.f32.xlu0 %v194
      %v196 = vpop.xlane.xlu0 %195
      %v197 = vsel %vm154, %v134, -inf
      %198 = vmax.xlane.f32.xlu0 %v197
      %v199 = vpop.xlane.xlu0 %198
      %v200 = vsel %vm154, %v135, -inf
      %201 = vmax.xlane.f32.xlu0 %v200
      %v202 = vpop.xlane.xlu0 %201
      %v203 = vsel %vm154, %v136, -inf
      %204 = vmax.xlane.f32.xlu0 %v203
      %v205 = vpop.xlane.xlu0 %204
      %v206 = vsel %vm154, %v137, -inf
      %207 = vmax.xlane.f32.xlu0 %v206
      %v208 = vpop.xlane.xlu0 %207
      %v209 = vsel %vm154, %v138, -inf
      %210 = vmax.xlane.f32.xlu0 %v209
      %v211 = vpop.xlane.xlu0 %210
      %v212 = vsel %vm154, %v139, -inf
      %213 = vmax.xlane.f32.xlu0 %v212
      %v214 = vpop.xlane.xlu0 %213
      %v215 = vsel %vm154, %v140, -inf
      %216 = vmax.xlane.f32.xlu0 %v215
      %v217 = vpop.xlane.xlu0 %216
      %v218 = vsel %vm154, %v141, -inf
      %219 = vmax.xlane.f32.xlu0 %v218
      %v220 = vpop.xlane.xlu0 %219
      %v221 = vsel %vm154, %v142, -inf
      %222 = vmax.xlane.f32.xlu0 %v221
      %v223 = vpop.xlane.xlu0 %222
      %v224 = vsel %vm154, %v143, -inf
      %225 = vmax.xlane.f32.xlu0 %v224
      %v226 = vpop.xlane.xlu0 %225
      %v227 = vsel %vm154, %v144, -inf
      %228 = vmax.xlane.f32.xlu0 %v227
      %v229 = vpop.xlane.xlu0 %228
      %v230 = vsel %vm154, %v145, -inf
      %231 = vmax.xlane.f32.xlu0 %v230
      %v232 = vpop.xlane.xlu0 %231
      %v233 = vsel %vm154, %v146, -inf
      %234 = vmax.xlane.f32.xlu0 %v233
      %v235 = vpop.xlane.xlu0 %234
      %v236 = vsel %vm154, %v147, -inf
      %237 = vmax.xlane.f32.xlu0 %v236
      %v238 = vpop.xlane.xlu0 %237
      %v239 = vsel %vm154, %v148, -inf
      %240 = vmax.xlane.f32.xlu0 %v239
      %v241 = vpop.xlane.xlu0 %240
      %v242 = vsel %vm154, %v149, -inf
      %243 = vmax.xlane.f32.xlu0 %v242
      %v244 = vpop.xlane.xlu0 %243
      %v245 = vsel %vm154, %v150, -inf
      %246 = vmax.xlane.f32.xlu0 %v245
      %v247 = vpop.xlane.xlu0 %246
      %v248 = vsel %vm154, %v151, -inf
      %249 = vmax.xlane.f32.xlu0 %v248
      %v250 = vpop.xlane.xlu0 %249
      %vm251 = vcmp.eq.f32.partialorder %v120, %v157
      %vm252 = vcmp.eq.f32.partialorder %v121, %v160
      %vm253 = vcmp.eq.f32.partialorder %v122, %v163
      %vm254 = vcmp.eq.f32.partialorder %v123, %v166
      %vm255 = vcmp.eq.f32.partialorder %v124, %v169
      %vm256 = vcmp.eq.f32.partialorder %v125, %v172
      %vm257 = vcmp.eq.f32.partialorder %v126, %v175
      %vm258 = vcmp.eq.f32.partialorder %v127, %v178
      %vm259 = vcmp.eq.f32.partialorder %v128, %v181
      %vm260 = vcmp.eq.f32.partialorder %v129, %v184
      %vm261 = vcmp.eq.f32.partialorder %v130, %v187
      %vm262 = vcmp.eq.f32.partialorder %v131, %v190
      %vm263 = vcmp.eq.f32.partialorder %v132, %v193
      %vm264 = vcmp.eq.f32.partialorder %v133, %v196
      %vm265 = vcmp.eq.f32.partialorder %v134, %v199
      %vm266 = vcmp.eq.f32.partialorder %v135, %v202
      %vm267 = vcmp.eq.f32.partialorder %v136, %v205
      %vm268 = vcmp.eq.f32.partialorder %v137, %v208
      %vm269 = vcmp.eq.f32.partialorder %v138, %v211
      %vm270 = vcmp.eq.f32.partialorder %v139, %v214
      %vm271 = vcmp.eq.f32.partialorder %v140, %v217
      %vm272 = vcmp.eq.f32.partialorder %v141, %v220
      %vm273 = vcmp.eq.f32.partialorder %v142, %v223
      %vm274 = vcmp.eq.f32.partialorder %v143, %v226
      %vm275 = vcmp.eq.f32.partialorder %v144, %v229
      %vm276 = vcmp.eq.f32.partialorder %v145, %v232
      %vm277 = vcmp.eq.f32.partialorder %v146, %v235
      %vm278 = vcmp.eq.f32.partialorder %v147, %v238
      %vm279 = vcmp.eq.f32.partialorder %v148, %v241
      %vm280 = vcmp.eq.f32.partialorder %v149, %v244
      %vm281 = vcmp.eq.f32.partialorder %v150, %v247
      %vm282 = vcmp.eq.f32.partialorder %v151, %v250
      %vm283 = vcmp.ne.f32.partialorder %v120, %v120
      %vm284 = vcmp.ne.f32.partialorder %v121, %v121
      %vm285 = vcmp.ne.f32.partialorder %v122, %v122
      %vm286 = vcmp.ne.f32.partialorder %v123, %v123
      %vm287 = vcmp.ne.f32.partialorder %v124, %v124
      %vm288 = vcmp.ne.f32.partialorder %v125, %v125
      %vm289 = vcmp.ne.f32.partialorder %v126, %v126
      %vm290 = vcmp.ne.f32.partialorder %v127, %v127
      %vm291 = vcmp.ne.f32.partialorder %v128, %v128
      %vm292 = vcmp.ne.f32.partialorder %v129, %v129
      %vm293 = vcmp.ne.f32.partialorder %v130, %v130
      %vm294 = vcmp.ne.f32.partialorder %v131, %v131
      %vm295 = vcmp.ne.f32.partialorder %v132, %v132
      %vm296 = vcmp.ne.f32.partialorder %v133, %v133
      %vm297 = vcmp.ne.f32.partialorder %v134, %v134
      %vm298 = vcmp.ne.f32.partialorder %v135, %v135
      %vm299 = vcmp.ne.f32.partialorder %v136, %v136
      %vm300 = vcmp.ne.f32.partialorder %v137, %v137
      %vm301 = vcmp.ne.f32.partialorder %v138, %v138
      %vm302 = vcmp.ne.f32.partialorder %v139, %v139
      %vm303 = vcmp.ne.f32.partialorder %v140, %v140
      %vm304 = vcmp.ne.f32.partialorder %v141, %v141
      %vm305 = vcmp.ne.f32.partialorder %v142, %v142
      %vm306 = vcmp.ne.f32.partialorder %v143, %v143
      %vm307 = vcmp.ne.f32.partialorder %v144, %v144
      %vm308 = vcmp.ne.f32.partialorder %v145, %v145
      %vm309 = vcmp.ne.f32.partialorder %v146, %v146
      %vm310 = vcmp.ne.f32.partialorder %v147, %v147
      %vm311 = vcmp.ne.f32.partialorder %v148, %v148
      %vm312 = vcmp.ne.f32.partialorder %v149, %v149
      %vm313 = vcmp.ne.f32.partialorder %v150, %v150
      %vm314 = vcmp.ne.f32.partialorder %v151, %v151
      %vm315 = vmor %vm251, %vm283
      %vm316 = vmor %vm252, %vm284
      %vm317 = vmor %vm253, %vm285
      %vm318 = vmor %vm254, %vm286
      %vm319 = vmor %vm255, %vm287
      %vm320 = vmor %vm256, %vm288
      %vm321 = vmor %vm257, %vm289
      %vm322 = vmor %vm258, %vm290
      %vm323 = vmor %vm259, %vm291
      %vm324 = vmor %vm260, %vm292
      %vm325 = vmor %vm261, %vm293
      %vm326 = vmor %vm262, %vm294
      %vm327 = vmor %vm263, %vm295
      %vm328 = vmor %vm264, %vm296
      %vm329 = vmor %vm265, %vm297
      %vm330 = vmor %vm266, %vm298
      %vm331 = vmor %vm267, %vm299
      %vm332 = vmor %vm268, %vm300
      %vm333 = vmor %vm269, %vm301
      %vm334 = vmor %vm270, %vm302
      %vm335 = vmor %vm271, %vm303
      %vm336 = vmor %vm272, %vm304
      %vm337 = vmor %vm273, %vm305
      %vm338 = vmor %vm274, %vm306
      %vm339 = vmor %vm275, %vm307
      %vm340 = vmor %vm276, %vm308
      %vm341 = vmor %vm277, %vm309
      %vm342 = vmor %vm278, %vm310
      %vm343 = vmor %vm279, %vm311
      %vm344 = vmor %vm280, %vm312
      %vm345 = vmor %vm281, %vm313
      %vm346 = vmor %vm282, %vm314
      %v347 = vsel %vm315, %v153, 32
      %v348 = vsel %vm316, %v153, 32
      %v349 = vsel %vm317, %v153, 32
      %v350 = vsel %vm318, %v153, 32
      %v351 = vsel %vm319, %v153, 32
      %v352 = vsel %vm320, %v153, 32
      %v353 = vsel %vm321, %v153, 32
      %v354 = vsel %vm322, %v153, 32
      %v355 = vsel %vm323, %v153, 32
      %v356 = vsel %vm324, %v153, 32
      %v357 = vsel %vm325, %v153, 32
      %v358 = vsel %vm326, %v153, 32
      %v359 = vsel %vm327, %v153, 32
      %v360 = vsel %vm328, %v153, 32
      %v361 = vsel %vm329, %v153, 32
      %v362 = vsel %vm330, %v153, 32
      %v363 = vsel %vm331, %v153, 32
      %v364 = vsel %vm332, %v153, 32
      %v365 = vsel %vm333, %v153, 32
      %v366 = vsel %vm334, %v153, 32
      %v367 = vsel %vm335, %v153, 32
      %v368 = vsel %vm336, %v153, 32
      %v369 = vsel %vm337, %v153, 32
      %v370 = vsel %vm338, %v153, 32
      %v371 = vsel %vm339, %v153, 32
      %v372 = vsel %vm340, %v153, 32
      %v373 = vsel %vm341, %v153, 32
      %v374 = vsel %vm342, %v153, 32
      %v375 = vsel %vm343, %v153, 32
      %v376 = vsel %vm344, %v153, 32
      %v377 = vsel %vm345, %v153, 32
      %v378 = vsel %vm346, %v153, 32
      %v379 = vsel %vm154, %v347, 2147483647
      %v380 = vand.u32 %v379, 65535
      %v381 = vshra.s32 %v379, 16
      %v382 = vcvt.s32.f32 %v380
      %v383 = vcvt.s32.f32 %v381
      %384 = vmin.xlane.f32.xlu0 %v383
      %v385 = vpop.xlane.xlu0 %384
      %vm386 = vcmp.eq.f32.partialorder %v383, %v385
      %v387 = vsel %vm386, %v382, inf
      %388 = vmin.xlane.f32.xlu0 %v387
      %v389 = vpop.xlane.xlu0 %388
      %v390 = vcvt.f32.s32 %v389
      %v391 = vcvt.f32.s32 %v385
      %v392 = vshll.u32 %v391, 16
      %v393 = vadd.s32 %v392, %v390
      %v394 = vsel %vm154, %v348, 2147483647
      %v395 = vand.u32 %v394, 65535
      %v396 = vshra.s32 %v394, 16
      %v397 = vcvt.s32.f32 %v395
      %v398 = vcvt.s32.f32 %v396
      %399 = vmin.xlane.f32.xlu0 %v398
      %v400 = vpop.xlane.xlu0 %399
      %vm401 = vcmp.eq.f32.partialorder %v398, %v400
      %v402 = vsel %vm401, %v397, inf
      %403 = vmin.xlane.f32.xlu0 %v402
      %v404 = vpop.xlane.xlu0 %403
      %v405 = vcvt.f32.s32 %v404
      %v406 = vcvt.f32.s32 %v400
      %v407 = vshll.u32 %v406, 16
      %v408 = vadd.s32 %v407, %v405
      %v409 = vsel %vm154, %v349, 2147483647
      %v410 = vand.u32 %v409, 65535
      %v411 = vshra.s32 %v409, 16
      %v412 = vcvt.s32.f32 %v410
      %v413 = vcvt.s32.f32 %v411
      %414 = vmin.xlane.f32.xlu0 %v413
      %v415 = vpop.xlane.xlu0 %414
      %vm416 = vcmp.eq.f32.partialorder %v413, %v415
      %v417 = vsel %vm416, %v412, inf
      %418 = vmin.xlane.f32.xlu0 %v417
      %v419 = vpop.xlane.xlu0 %418
      %v420 = vcvt.f32.s32 %v419
      %v421 = vcvt.f32.s32 %v415
      %v422 = vshll.u32 %v421, 16
      %v423 = vadd.s32 %v422, %v420
      %v424 = vsel %vm154, %v350, 2147483647
      %v425 = vand.u32 %v424, 65535
      %v426 = vshra.s32 %v424, 16
      %v427 = vcvt.s32.f32 %v425
      %v428 = vcvt.s32.f32 %v426
      %429 = vmin.xlane.f32.xlu0 %v428
      %v430 = vpop.xlane.xlu0 %429
      %vm431 = vcmp.eq.f32.partialorder %v428, %v430
      %v432 = vsel %vm431, %v427, inf
      %433 = vmin.xlane.f32.xlu0 %v432
      %v434 = vpop.xlane.xlu0 %433
      %v435 = vcvt.f32.s32 %v434
      %v436 = vcvt.f32.s32 %v430
      %v437 = vshll.u32 %v436, 16
      %v438 = vadd.s32 %v437, %v435
      %v439 = vsel %vm154, %v351, 2147483647
      %v440 = vand.u32 %v439, 65535
      %v441 = vshra.s32 %v439, 16
      %v442 = vcvt.s32.f32 %v440
      %v443 = vcvt.s32.f32 %v441
      %444 = vmin.xlane.f32.xlu0 %v443
      %v445 = vpop.xlane.xlu0 %444
      %vm446 = vcmp.eq.f32.partialorder %v443, %v445
      %v447 = vsel %vm446, %v442, inf
      %448 = vmin.xlane.f32.xlu0 %v447
      %v449 = vpop.xlane.xlu0 %448
      %v450 = vcvt.f32.s32 %v449
      %v451 = vcvt.f32.s32 %v445
      %v452 = vshll.u32 %v451, 16
      %v453 = vadd.s32 %v452, %v450
      %v454 = vsel %vm154, %v352, 2147483647
      %v455 = vand.u32 %v454, 65535
      %v456 = vshra.s32 %v454, 16
      %v457 = vcvt.s32.f32 %v455
      %v458 = vcvt.s32.f32 %v456
      %459 = vmin.xlane.f32.xlu0 %v458
      %v460 = vpop.xlane.xlu0 %459
      %vm461 = vcmp.eq.f32.partialorder %v458, %v460
      %v462 = vsel %vm461, %v457, inf
      %463 = vmin.xlane.f32.xlu0 %v462
      %v464 = vpop.xlane.xlu0 %463
      %v465 = vcvt.f32.s32 %v464
      %v466 = vcvt.f32.s32 %v460
      %v467 = vshll.u32 %v466, 16
      %v468 = vadd.s32 %v467, %v465
      %v469 = vsel %vm154, %v353, 2147483647
      %v470 = vand.u32 %v469, 65535
      %v471 = vshra.s32 %v469, 16
      %v472 = vcvt.s32.f32 %v470
      %v473 = vcvt.s32.f32 %v471
      %474 = vmin.xlane.f32.xlu0 %v473
      %v475 = vpop.xlane.xlu0 %474
      %vm476 = vcmp.eq.f32.partialorder %v473, %v475
      %v477 = vsel %vm476, %v472, inf
      %478 = vmin.xlane.f32.xlu0 %v477
      %v479 = vpop.xlane.xlu0 %478
      %v480 = vcvt.f32.s32 %v479
      %v481 = vcvt.f32.s32 %v475
      %v482 = vshll.u32 %v481, 16
      %v483 = vadd.s32 %v482, %v480
      %v484 = vsel %vm154, %v354, 2147483647
      %v485 = vand.u32 %v484, 65535
      %v486 = vshra.s32 %v484, 16
      %v487 = vcvt.s32.f32 %v485
      %v488 = vcvt.s32.f32 %v486
      %489 = vmin.xlane.f32.xlu0 %v488
      %v490 = vpop.xlane.xlu0 %489
      %vm491 = vcmp.eq.f32.partialorder %v488, %v490
      %v492 = vsel %vm491, %v487, inf
      %493 = vmin.xlane.f32.xlu0 %v492
      %v494 = vpop.xlane.xlu0 %493
      %v495 = vcvt.f32.s32 %v494
      %v496 = vcvt.f32.s32 %v490
      %v497 = vshll.u32 %v496, 16
      %v498 = vadd.s32 %v497, %v495
      %v499 = vsel %vm154, %v355, 2147483647
      %v500 = vand.u32 %v499, 65535
      %v501 = vshra.s32 %v499, 16
      %v502 = vcvt.s32.f32 %v500
      %v503 = vcvt.s32.f32 %v501
      %504 = vmin.xlane.f32.xlu0 %v503
      %v505 = vpop.xlane.xlu0 %504
      %vm506 = vcmp.eq.f32.partialorder %v503, %v505
      %v507 = vsel %vm506, %v502, inf
      %508 = vmin.xlane.f32.xlu0 %v507
      %v509 = vpop.xlane.xlu0 %508
      %v510 = vcvt.f32.s32 %v509
      %v511 = vcvt.f32.s32 %v505
      %v512 = vshll.u32 %v511, 16
      %v513 = vadd.s32 %v512, %v510
      %v514 = vsel %vm154, %v356, 2147483647
      %v515 = vand.u32 %v514, 65535
      %v516 = vshra.s32 %v514, 16
      %v517 = vcvt.s32.f32 %v515
      %v518 = vcvt.s32.f32 %v516
      %519 = vmin.xlane.f32.xlu0 %v518
      %v520 = vpop.xlane.xlu0 %519
      %vm521 = vcmp.eq.f32.partialorder %v518, %v520
      %v522 = vsel %vm521, %v517, inf
      %523 = vmin.xlane.f32.xlu0 %v522
      %v524 = vpop.xlane.xlu0 %523
      %v525 = vcvt.f32.s32 %v524
      %v526 = vcvt.f32.s32 %v520
      %v527 = vshll.u32 %v526, 16
      %v528 = vadd.s32 %v527, %v525
      %v529 = vsel %vm154, %v357, 2147483647
      %v530 = vand.u32 %v529, 65535
      %v531 = vshra.s32 %v529, 16
      %v532 = vcvt.s32.f32 %v530
      %v533 = vcvt.s32.f32 %v531
      %534 = vmin.xlane.f32.xlu0 %v533
      %v535 = vpop.xlane.xlu0 %534
      %vm536 = vcmp.eq.f32.partialorder %v533, %v535
      %v537 = vsel %vm536, %v532, inf
      %538 = vmin.xlane.f32.xlu0 %v537
      %v539 = vpop.xlane.xlu0 %538
      %v540 = vcvt.f32.s32 %v539
      %v541 = vcvt.f32.s32 %v535
      %v542 = vshll.u32 %v541, 16
      %v543 = vadd.s32 %v542, %v540
      %v544 = vsel %vm154, %v358, 2147483647
      %v545 = vand.u32 %v544, 65535
      %v546 = vshra.s32 %v544, 16
      %v547 = vcvt.s32.f32 %v545
      %v548 = vcvt.s32.f32 %v546
      %549 = vmin.xlane.f32.xlu0 %v548
      %v550 = vpop.xlane.xlu0 %549
      %vm551 = vcmp.eq.f32.partialorder %v548, %v550
      %v552 = vsel %vm551, %v547, inf
      %553 = vmin.xlane.f32.xlu0 %v552
      %v554 = vpop.xlane.xlu0 %553
      %v555 = vcvt.f32.s32 %v554
      %v556 = vcvt.f32.s32 %v550
      %v557 = vshll.u32 %v556, 16
      %v558 = vadd.s32 %v557, %v555
      %v559 = vsel %vm154, %v359, 2147483647
      %v560 = vand.u32 %v559, 65535
      %v561 = vshra.s32 %v559, 16
      %v562 = vcvt.s32.f32 %v560
      %v563 = vcvt.s32.f32 %v561
      %564 = vmin.xlane.f32.xlu0 %v563
      %v565 = vpop.xlane.xlu0 %564
      %vm566 = vcmp.eq.f32.partialorder %v563, %v565
      %v567 = vsel %vm566, %v562, inf
      %568 = vmin.xlane.f32.xlu0 %v567
      %v569 = vpop.xlane.xlu0 %568
      %v570 = vcvt.f32.s32 %v569
      %v571 = vcvt.f32.s32 %v565
      %v572 = vshll.u32 %v571, 16
      %v573 = vadd.s32 %v572, %v570
      %v574 = vsel %vm154, %v360, 2147483647
      %v575 = vand.u32 %v574, 65535
      %v576 = vshra.s32 %v574, 16
      %v577 = vcvt.s32.f32 %v575
      %v578 = vcvt.s32.f32 %v576
      %579 = vmin.xlane.f32.xlu0 %v578
      %v580 = vpop.xlane.xlu0 %579
      %vm581 = vcmp.eq.f32.partialorder %v578, %v580
      %v582 = vsel %vm581, %v577, inf
      %583 = vmin.xlane.f32.xlu0 %v582
      %v584 = vpop.xlane.xlu0 %583
      %v585 = vcvt.f32.s32 %v584
      %v586 = vcvt.f32.s32 %v580
      %v587 = vshll.u32 %v586, 16
      %v588 = vadd.s32 %v587, %v585
      %v589 = vsel %vm154, %v361, 2147483647
      %v590 = vand.u32 %v589, 65535
      %v591 = vshra.s32 %v589, 16
      %v592 = vcvt.s32.f32 %v590
      %v593 = vcvt.s32.f32 %v591
      %594 = vmin.xlane.f32.xlu0 %v593
      %v595 = vpop.xlane.xlu0 %594
      %vm596 = vcmp.eq.f32.partialorder %v593, %v595
      %v597 = vsel %vm596, %v592, inf
      %598 = vmin.xlane.f32.xlu0 %v597
      %v599 = vpop.xlane.xlu0 %598
      %v600 = vcvt.f32.s32 %v599
      %v601 = vcvt.f32.s32 %v595
      %v602 = vshll.u32 %v601, 16
      %v603 = vadd.s32 %v602, %v600
      %v604 = vsel %vm154, %v362, 2147483647
      %v605 = vand.u32 %v604, 65535
      %v606 = vshra.s32 %v604, 16
      %v607 = vcvt.s32.f32 %v605
      %v608 = vcvt.s32.f32 %v606
      %609 = vmin.xlane.f32.xlu0 %v608
      %v610 = vpop.xlane.xlu0 %609
      %vm611 = vcmp.eq.f32.partialorder %v608, %v610
      %v612 = vsel %vm611, %v607, inf
      %613 = vmin.xlane.f32.xlu0 %v612
      %v614 = vpop.xlane.xlu0 %613
      %v615 = vcvt.f32.s32 %v614
      %v616 = vcvt.f32.s32 %v610
      %v617 = vshll.u32 %v616, 16
      %v618 = vadd.s32 %v617, %v615
      %v619 = vsel %vm154, %v363, 2147483647
      %v620 = vand.u32 %v619, 65535
      %v621 = vshra.s32 %v619, 16
      %v622 = vcvt.s32.f32 %v620
      %v623 = vcvt.s32.f32 %v621
      %624 = vmin.xlane.f32.xlu0 %v623
      %v625 = vpop.xlane.xlu0 %624
      %vm626 = vcmp.eq.f32.partialorder %v623, %v625
      %v627 = vsel %vm626, %v622, inf
      %628 = vmin.xlane.f32.xlu0 %v627
      %v629 = vpop.xlane.xlu0 %628
      %v630 = vcvt.f32.s32 %v629
      %v631 = vcvt.f32.s32 %v625
      %v632 = vshll.u32 %v631, 16
      %v633 = vadd.s32 %v632, %v630
      %v634 = vsel %vm154, %v364, 2147483647
      %v635 = vand.u32 %v634, 65535
      %v636 = vshra.s32 %v634, 16
      %v637 = vcvt.s32.f32 %v635
      %v638 = vcvt.s32.f32 %v636
      %639 = vmin.xlane.f32.xlu0 %v638
      %v640 = vpop.xlane.xlu0 %639
      %vm641 = vcmp.eq.f32.partialorder %v638, %v640
      %v642 = vsel %vm641, %v637, inf
      %643 = vmin.xlane.f32.xlu0 %v642
      %v644 = vpop.xlane.xlu0 %643
      %v645 = vcvt.f32.s32 %v644
      %v646 = vcvt.f32.s32 %v640
      %v647 = vshll.u32 %v646, 16
      %v648 = vadd.s32 %v647, %v645
      %v649 = vsel %vm154, %v365, 2147483647
      %v650 = vand.u32 %v649, 65535
      %v651 = vshra.s32 %v649, 16
      %v652 = vcvt.s32.f32 %v650
      %v653 = vcvt.s32.f32 %v651
      %654 = vmin.xlane.f32.xlu0 %v653
      %v655 = vpop.xlane.xlu0 %654
      %vm656 = vcmp.eq.f32.partialorder %v653, %v655
      %v657 = vsel %vm656, %v652, inf
      %658 = vmin.xlane.f32.xlu0 %v657
      %v659 = vpop.xlane.xlu0 %658
      %v660 = vcvt.f32.s32 %v659
      %v661 = vcvt.f32.s32 %v655
      %v662 = vshll.u32 %v661, 16
      %v663 = vadd.s32 %v662, %v660
      %v664 = vsel %vm154, %v366, 2147483647
      %v665 = vand.u32 %v664, 65535
      %v666 = vshra.s32 %v664, 16
      %v667 = vcvt.s32.f32 %v665
      %v668 = vcvt.s32.f32 %v666
      %669 = vmin.xlane.f32.xlu0 %v668
      %v670 = vpop.xlane.xlu0 %669
      %vm671 = vcmp.eq.f32.partialorder %v668, %v670
      %v672 = vsel %vm671, %v667, inf
      %673 = vmin.xlane.f32.xlu0 %v672
      %v674 = vpop.xlane.xlu0 %673
      %v675 = vcvt.f32.s32 %v674
      %v676 = vcvt.f32.s32 %v670
      %v677 = vshll.u32 %v676, 16
      %v678 = vadd.s32 %v677, %v675
      %v679 = vsel %vm154, %v367, 2147483647
      %v680 = vand.u32 %v679, 65535
      %v681 = vshra.s32 %v679, 16
      %v682 = vcvt.s32.f32 %v680
      %v683 = vcvt.s32.f32 %v681
      %684 = vmin.xlane.f32.xlu0 %v683
      %v685 = vpop.xlane.xlu0 %684
      %vm686 = vcmp.eq.f32.partialorder %v683, %v685
      %v687 = vsel %vm686, %v682, inf
      %688 = vmin.xlane.f32.xlu0 %v687
      %v689 = vpop.xlane.xlu0 %688
      %v690 = vcvt.f32.s32 %v689
      %v691 = vcvt.f32.s32 %v685
      %v692 = vshll.u32 %v691, 16
      %v693 = vadd.s32 %v692, %v690
      %v694 = vsel %vm154, %v368, 2147483647
      %v695 = vand.u32 %v694, 65535
      %v696 = vshra.s32 %v694, 16
      %v697 = vcvt.s32.f32 %v695
      %v698 = vcvt.s32.f32 %v696
      %699 = vmin.xlane.f32.xlu0 %v698
      %v700 = vpop.xlane.xlu0 %699
      %vm701 = vcmp.eq.f32.partialorder %v698, %v700
      %v702 = vsel %vm701, %v697, inf
      %703 = vmin.xlane.f32.xlu0 %v702
      %v704 = vpop.xlane.xlu0 %703
      %v705 = vcvt.f32.s32 %v704
      %v706 = vcvt.f32.s32 %v700
      %v707 = vshll.u32 %v706, 16
      %v708 = vadd.s32 %v707, %v705
      %v709 = vsel %vm154, %v369, 2147483647
      %v710 = vand.u32 %v709, 65535
      %v711 = vshra.s32 %v709, 16
      %v712 = vcvt.s32.f32 %v710
      %v713 = vcvt.s32.f32 %v711
      %714 = vmin.xlane.f32.xlu0 %v713
      %v715 = vpop.xlane.xlu0 %714
      %vm716 = vcmp.eq.f32.partialorder %v713, %v715
      %v717 = vsel %vm716, %v712, inf
      %718 = vmin.xlane.f32.xlu0 %v717
      %v719 = vpop.xlane.xlu0 %718
      %v720 = vcvt.f32.s32 %v719
      %v721 = vcvt.f32.s32 %v715
      %v722 = vshll.u32 %v721, 16
      %v723 = vadd.s32 %v722, %v720
      %v724 = vsel %vm154, %v370, 2147483647
      %v725 = vand.u32 %v724, 65535
      %v726 = vshra.s32 %v724, 16
      %v727 = vcvt.s32.f32 %v725
      %v728 = vcvt.s32.f32 %v726
      %729 = vmin.xlane.f32.xlu0 %v728
      %v730 = vpop.xlane.xlu0 %729
      %vm731 = vcmp.eq.f32.partialorder %v728, %v730
      %v732 = vsel %vm731, %v727, inf
      %733 = vmin.xlane.f32.xlu0 %v732
      %v734 = vpop.xlane.xlu0 %733
      %v735 = vcvt.f32.s32 %v734
      %v736 = vcvt.f32.s32 %v730
      %v737 = vshll.u32 %v736, 16
      %v738 = vadd.s32 %v737, %v735
      %v739 = vsel %vm154, %v371, 2147483647
      %v740 = vand.u32 %v739, 65535
      %v741 = vshra.s32 %v739, 16
      %v742 = vcvt.s32.f32 %v740
      %v743 = vcvt.s32.f32 %v741
      %744 = vmin.xlane.f32.xlu0 %v743
      %v745 = vpop.xlane.xlu0 %744
      %vm746 = vcmp.eq.f32.partialorder %v743, %v745
      %v747 = vsel %vm746, %v742, inf
      %748 = vmin.xlane.f32.xlu0 %v747
      %v749 = vpop.xlane.xlu0 %748
      %v750 = vcvt.f32.s32 %v749
      %v751 = vcvt.f32.s32 %v745
      %v752 = vshll.u32 %v751, 16
      %v753 = vadd.s32 %v752, %v750
      %v754 = vsel %vm154, %v372, 2147483647
      %v755 = vand.u32 %v754, 65535
      %v756 = vshra.s32 %v754, 16
      %v757 = vcvt.s32.f32 %v755
      %v758 = vcvt.s32.f32 %v756
      %759 = vmin.xlane.f32.xlu0 %v758
      %v760 = vpop.xlane.xlu0 %759
      %vm761 = vcmp.eq.f32.partialorder %v758, %v760
      %v762 = vsel %vm761, %v757, inf
      %763 = vmin.xlane.f32.xlu0 %v762
      %v764 = vpop.xlane.xlu0 %763
      %v765 = vcvt.f32.s32 %v764
      %v766 = vcvt.f32.s32 %v760
      %v767 = vshll.u32 %v766, 16
      %v768 = vadd.s32 %v767, %v765
      %v769 = vsel %vm154, %v373, 2147483647
      %v770 = vand.u32 %v769, 65535
      %v771 = vshra.s32 %v769, 16
      %v772 = vcvt.s32.f32 %v770
      %v773 = vcvt.s32.f32 %v771
      %774 = vmin.xlane.f32.xlu0 %v773
      %v775 = vpop.xlane.xlu0 %774
      %vm776 = vcmp.eq.f32.partialorder %v773, %v775
      %v777 = vsel %vm776, %v772, inf
      %778 = vmin.xlane.f32.xlu0 %v777
      %v779 = vpop.xlane.xlu0 %778
      %v780 = vcvt.f32.s32 %v779
      %v781 = vcvt.f32.s32 %v775
      %v782 = vshll.u32 %v781, 16
      %v783 = vadd.s32 %v782, %v780
      %v784 = vsel %vm154, %v374, 2147483647
      %v785 = vand.u32 %v784, 65535
      %v786 = vshra.s32 %v784, 16
      %v787 = vcvt.s32.f32 %v785
      %v788 = vcvt.s32.f32 %v786
      %789 = vmin.xlane.f32.xlu0 %v788
      %v790 = vpop.xlane.xlu0 %789
      %vm791 = vcmp.eq.f32.partialorder %v788, %v790
      %v792 = vsel %vm791, %v787, inf
      %793 = vmin.xlane.f32.xlu0 %v792
      %v794 = vpop.xlane.xlu0 %793
      %v795 = vcvt.f32.s32 %v794
      %v796 = vcvt.f32.s32 %v790
      %v797 = vshll.u32 %v796, 16
      %v798 = vadd.s32 %v797, %v795
      %v799 = vsel %vm154, %v375, 2147483647
      %v800 = vand.u32 %v799, 65535
      %v801 = vshra.s32 %v799, 16
      %v802 = vcvt.s32.f32 %v800
      %v803 = vcvt.s32.f32 %v801
      %804 = vmin.xlane.f32.xlu0 %v803
      %v805 = vpop.xlane.xlu0 %804
      %vm806 = vcmp.eq.f32.partialorder %v803, %v805
      %v807 = vsel %vm806, %v802, inf
      %808 = vmin.xlane.f32.xlu0 %v807
      %v809 = vpop.xlane.xlu0 %808
      %v810 = vcvt.f32.s32 %v809
      %v811 = vcvt.f32.s32 %v805
      %v812 = vshll.u32 %v811, 16
      %v813 = vadd.s32 %v812, %v810
      %v814 = vsel %vm154, %v376, 2147483647
      %v815 = vand.u32 %v814, 65535
      %v816 = vshra.s32 %v814, 16
      %v817 = vcvt.s32.f32 %v815
      %v818 = vcvt.s32.f32 %v816
      %819 = vmin.xlane.f32.xlu0 %v818
      %v820 = vpop.xlane.xlu0 %819
      %vm821 = vcmp.eq.f32.partialorder %v818, %v820
      %v822 = vsel %vm821, %v817, inf
      %823 = vmin.xlane.f32.xlu0 %v822
      %v824 = vpop.xlane.xlu0 %823
      %v825 = vcvt.f32.s32 %v824
      %v826 = vcvt.f32.s32 %v820
      %v827 = vshll.u32 %v826, 16
      %v828 = vadd.s32 %v827, %v825
      %v829 = vsel %vm154, %v377, 2147483647
      %v830 = vand.u32 %v829, 65535
      %v831 = vshra.s32 %v829, 16
      %v832 = vcvt.s32.f32 %v830
      %v833 = vcvt.s32.f32 %v831
      %834 = vmin.xlane.f32.xlu0 %v833
      %v835 = vpop.xlane.xlu0 %834
      %vm836 = vcmp.eq.f32.partialorder %v833, %v835
      %v837 = vsel %vm836, %v832, inf
      %838 = vmin.xlane.f32.xlu0 %v837
      %v839 = vpop.xlane.xlu0 %838
      %v840 = vcvt.f32.s32 %v839
      %v841 = vcvt.f32.s32 %v835
      %v842 = vshll.u32 %v841, 16
      %v843 = vadd.s32 %v842, %v840
      %v844 = vsel %vm154, %v378, 2147483647
      %v845 = vand.u32 %v844, 65535
      %v846 = vshra.s32 %v844, 16
      %v847 = vcvt.s32.f32 %v845
      %v848 = vcvt.s32.f32 %v846
      %849 = vmin.xlane.f32.xlu0 %v848
      %v850 = vpop.xlane.xlu0 %849
      %vm851 = vcmp.eq.f32.partialorder %v848, %v850
      %v852 = vsel %vm851, %v847, inf
      %853 = vmin.xlane.f32.xlu0 %v852
      %v854 = vpop.xlane.xlu0 %853
      %v855 = vcvt.f32.s32 %v854
      %v856 = vcvt.f32.s32 %v850
      %v857 = vshll.u32 %v856, 16
      %v858 = vadd.s32 %v857, %v855
      %vm859 = vcmask 7168
      %860 = vst.msk [vmem:[%s118] sm:$0xff] %vm859, %v393
      %861 = vst.msk [vmem:[%s118 + $0x8] sm:$0xff] %vm859, %v408
      %862 = vst.msk [vmem:[%s118 + $0x10] sm:$0xff] %vm859, %v423
      %863 = vst.msk [vmem:[%s118 + $0x18] sm:$0xff] %vm859, %v438
      %864 = vst.msk [vmem:[%s118 + $0x20] sm:$0xff] %vm859, %v453
      %865 = vst.msk [vmem:[%s118 + $0x28] sm:$0xff] %vm859, %v468
      %866 = vst.msk [vmem:[%s118 + $0x30] sm:$0xff] %vm859, %v483
      %867 = vst.msk [vmem:[%s118 + $0x38] sm:$0xff] %vm859, %v498
      %868 = vst.msk [vmem:[%s118 + $0x40] sm:$0xff] %vm859, %v513
      %869 = vst.msk [vmem:[%s118 + $0x48] sm:$0xff] %vm859, %v528
      %870 = vst.msk [vmem:[%s118 + $0x50] sm:$0xff] %vm859, %v543
      %871 = vst.msk [vmem:[%s118 + $0x58] sm:$0xff] %vm859, %v558
      %872 = vst.msk [vmem:[%s118 + $0x60] sm:$0xff] %vm859, %v573
      %873 = vst.msk [vmem:[%s118 + $0x68] sm:$0xff] %vm859, %v588
      %874 = vst.msk [vmem:[%s118 + $0x70] sm:$0xff] %vm859, %v603
      %875 = vst.msk [vmem:[%s118 + $0x78] sm:$0xff] %vm859, %v618
      %876 = vst.msk [vmem:[%s118 + $0x80] sm:$0xff] %vm859, %v633
      %877 = vst.msk [vmem:[%s118 + $0x88] sm:$0xff] %vm859, %v648
      %878 = vst.msk [vmem:[%s118 + $0x90] sm:$0xff] %vm859, %v663
      %879 = vst.msk [vmem:[%s118 + $0x98] sm:$0xff] %vm859, %v678
      %880 = vst.msk [vmem:[%s118 + $0xa0] sm:$0xff] %vm859, %v693
      %881 = vst.msk [vmem:[%s118 + $0xa8] sm:$0xff] %vm859, %v708
      %882 = vst.msk [vmem:[%s118 + $0xb0] sm:$0xff] %vm859, %v723
      %883 = vst.msk [vmem:[%s118 + $0xb8] sm:$0xff] %vm859, %v738
      %884 = vst.msk [vmem:[%s118 + $0xc0] sm:$0xff] %vm859, %v753
      %885 = vst.msk [vmem:[%s118 + $0xc8] sm:$0xff] %vm859, %v768
      %886 = vst.msk [vmem:[%s118 + $0xd0] sm:$0xff] %vm859, %v783
      %887 = vst.msk [vmem:[%s118 + $0xd8] sm:$0xff] %vm859, %v798
      %888 = vst.msk [vmem:[%s118 + $0xe0] sm:$0xff] %vm859, %v813
      %889 = vst.msk [vmem:[%s118 + $0xe8] sm:$0xff] %vm859, %v828
      %890 = vst.msk [vmem:[%s118 + $0xf0] sm:$0xff] %vm859, %v843
      %891 = vst.msk [vmem:[%s118 + $0xf8] sm:$0xff] %vm859, %v858
      %s892 = smul.u32 32, %s12
      %p893 = scmp.lt.s32.totalorder %s892, 127
      %s894 = scalar_select %p893, %s892, 127
      %s895 = smul.addr %s894, 8
      %s896 = scalar_lea.vmem %s1, %s895
      // Predicated region
      $region25: #{tpu_custom_call.1} parent=23 // pred_check
        %p897 = pneg %p56
      $region26: #{tpu_custom_call.1} parent=23 // pred_check_branch
        %899 = sbr.rel (%p897) target = $region28
      $region27: #{tpu_custom_call.1} parent=23 // pred_region
        %s900 = smul.u32 32, %s12
      $region28: #{tpu_custom_call.1} parent=23 // pred_fallthru
        _
    $region24: #{tpu_custom_call.1} parent=5 // pred_fallthru
      _
    %p901 = scmp.le.s32.totalorder 2, %s7
    // Predicated region
    $region29: #{tpu_custom_call.1} parent=5 // pred_check
      %p902 = pneg %p901
    $region30: #{tpu_custom_call.1} parent=5 // pred_check_branch
      %904 = sbr.rel (%p902) target = $region32
    $region31: #{tpu_custom_call.1} parent=5 // pred_region
      %s905 = ssub.s32 %s7, 2
      // Predicated region
      $region33: #{tpu_custom_call.1} parent=31 // pred_check
        %p906 = pneg %p62
      $region34: #{tpu_custom_call.1} parent=31 // pred_check_branch
        %908 = sbr.rel (%p906) target = $region36
      $region35: #{tpu_custom_call.1} parent=31 // pred_region
        %s909 = smul.u32 32, %s13
        %p910 = scmp.lt.s32.totalorder %s909, 127
        %s911 = scalar_select %p910, %s909, 127
        %s912 = smul.addr %s911, 8
        %s913 = scalar_lea.vmem %s1, %s912
      $region36: #{tpu_custom_call.1} parent=31 // pred_fallthru
        _
    $region32: #{tpu_custom_call.1} parent=5 // pred_fallthru
      _
  $region6: #{tpu_custom_call.1} parent=0 // loop_footer
    %s11 = sadd.s32 1, %s7
  $region7: #{tpu_custom_call.1} parent=0 // loop_footer_branch
    %6 = sbr.rel target = $region3
  $region8: #{tpu_custom_call.1} parent=0 // loop_exit
    _

</llo_original>
